<compile_context>
chip_gen: v7x
topology: tpu7x:2x2x1
jax: 0.10.0
libtpu: 0.0.40
codegen_flags: <defaults>
</compile_context>

<pallas_src>
import functools

import jax
import jax.numpy as jnp
from jax.experimental import pallas as pl
from jax.experimental.pallas import tpu as pltpu


def _affine_grid_kernel(theta_ref, xs_ref, ys_ref, mask_ref, out_ref, *, n_batch):
    """One grid step: writes a (b_tile, R, C) block of interleaved x/y coords.

    theta_ref: SMEM (N*6,) f32, (t00, t01, t02, t10, t11, t12) per batch.
    xs_ref / ys_ref: VMEM (R, C) f32 base sampling coords (resident across steps).
    mask_ref: VMEM (R, C) f32, 1.0 on x-channel elements, 0.0 on y-channel ones.
    out_ref: VMEM (b_tile, R, C) f32 output block.
    """
    tile = pl.program_id(0)
    b_tile = out_ref.shape[0]

    # Loaded / derived once per grid step; no per-step iota/convert rebuild.
    xs = xs_ref[...]
    ys = ys_ref[...]
    is_x = mask_ref[...] != 0.0

    def body(i, carry):
        # Clamp so tail batches of a partial last tile still read valid SMEM
        # (their duplicate output rows are dropped by the clipped writeback DMA).
        b = jnp.minimum(tile * b_tile + i, n_batch - 1)
        base = b * 6
        t00 = theta_ref[base + 0]
        t01 = theta_ref[base + 1]
        t02 = theta_ref[base + 2]
        t10 = theta_ref[base + 3]
        t11 = theta_ref[base + 4]
        t12 = theta_ref[base + 5]
        # Interleaved coefficients: x-row or y-row of theta per element parity.
        a = jnp.where(is_x, t00, t10)
        c1 = jnp.where(is_x, t01, t11)
        c0 = jnp.where(is_x, t02, t12)
        out_ref[i] = a * xs + (c1 * ys + c0)
        return carry

    # Partial unroll: LLO scheduling visibility without imem blowup at b_tile=16.
    jax.lax.fori_loop(0, b_tile, body, 0, unroll=min(8, b_tile))


def _tensorcores_per_chip():
    # v7x (and v4 megacore) shard a 1-D "parallel" grid across 2 TensorCores;
    # v5e/v6e have a single TC. Safe fallback: assume single TC.
    try:
        kind = jax.devices()[0].device_kind.lower()
    except Exception:
        return 1
    return 2 if any(tok in kind for tok in ("v7", "7x", "v4")) else 1


class AffineGridGen:
    """Dense correspondence map generator for an affine transform (Pallas/TPU)."""

    def __init__(self, out_h=240, out_w=240, out_ch=3):
        self.out_h = out_h
        self.out_w = out_w
        self.out_ch = out_ch  # only shapes the (unused) out_size, as in PyTorch

        H, W = out_h, out_w
        total = H * W * 2
        # Lane-dense layout when possible (2W=480 is not a multiple of 128, but
        # H*2W usually is); fallback keeps the (H, 2W) interleaved layout.
        if total % 128 == 0:
            R, C = total // 128, 128
        else:
            R, C = H, 2 * W
        self._layout = (R, C)

        # Base sampling grid (align_corners=False), pixel centers, interleaved x/y.
        # Uses the exact reference formula (2k+1)/K - 1.
        f = jnp.arange(total, dtype=jnp.int32)
        w = (f % (2 * W)) // 2
        h = f // (2 * W)
        ch = f % 2  # 0 -> x channel, 1 -> y channel
        xs = (2.0 * w.astype(jnp.float32) + 1.0) / W - 1.0
        ys = (2.0 * h.astype(jnp.float32) + 1.0) / H - 1.0
        self._xs = xs.reshape(R, C)
        self._ys = ys.reshape(R, C)
        self._mask = (ch == 0).astype(jnp.float32).reshape(R, C)

    def __call__(self, theta):
        return self.forward(theta)

    def forward(self, theta):
        theta = jnp.asarray(theta, dtype=jnp.float32)
        if theta.ndim != 3 or theta.shape[1:] != (2, 3):
            theta = theta.reshape(-1, 2, 3)
        n = theta.shape[0]
        theta_flat = theta.reshape(n * 6)

        H, W = self.out_h, self.out_w
        R, C = self._layout
        row_bytes = R * C * 4  # per-batch output bytes

        # Batch tile: big tiles amortize the ~0.35us/step pipeline overhead; cap so
        # the double-buffered output block stays well inside every generation's
        # VMEM (v7x: 64 MiB physical; scoped limit raised explicitly below).
        budget = 40 << 20
        b_cap = max(1, min(16, budget // (2 * row_bytes), n))
        steps = pl.cdiv(n, b_cap)
        if _tensorcores_per_chip() > 1 and n >= 2:
            # Even step count >= 2 so the ("parallel",) grid balances across both
            # v7x TensorCores; single-TC chips keep the minimal step count.
            steps = max(2, steps)
            if steps % 2:
                steps += 1
        b_tile = max(1, pl.cdiv(n, steps))
        steps = pl.cdiv(n, b_tile)

        # 2x (double-buffered) output block + 3 resident base arrays (x2 buffers)
        # + internal scratch headroom. At least 32 MiB so v5e's 16 MiB default
        # scoped limit never forces a smaller tiling.
        vmem_need = (2 * b_tile + 6) * row_bytes + (2 << 20)
        vmem_limit = int(max(vmem_need, 32 << 20))

        out = pl.pallas_call(
            functools.partial(_affine_grid_kernel, n_batch=n),
            out_shape=jax.ShapeDtypeStruct((n, R, C), jnp.float32),
            grid=(steps,),
            in_specs=[
                pl.BlockSpec(memory_space=pltpu.MemorySpace.SMEM),  # theta (flat)
                pl.BlockSpec((R, C), lambda t: (0, 0)),             # xs (resident)
                pl.BlockSpec((R, C), lambda t: (0, 0)),             # ys (resident)
                pl.BlockSpec((R, C), lambda t: (0, 0)),             # x/y parity mask
            ],
            out_specs=pl.BlockSpec((b_tile, R, C), lambda t: (t, 0, 0)),
            compiler_params=pltpu.CompilerParams(
                dimension_semantics=("parallel",),
                vmem_limit_bytes=vmem_limit,
            ),
            cost_estimate=pl.CostEstimate(
                flops=8 * n * H * W,
                transcendentals=0,
                bytes_accessed=n * row_bytes + 3 * row_bytes + n * 6 * 4,
            ),
        )(theta_flat, self._xs, self._ys, self._mask)

        # Row-major (N, R, C) -> (N, H, W, 2): free reshape; x in channel 0, y in
        # channel 1, matching F.affine_grid with align_corners=False.
        return out.reshape(n, H, W, 2)


def _reference_affine_grid(theta, H, W):
    # Pure-JAX reference of F.affine_grid(theta, (N, C, H, W), align_corners=False)
    xs = (2.0 * jnp.arange(W, dtype=jnp.float32) + 1.0) / W - 1.0
    ys = (2.0 * jnp.arange(H, dtype=jnp.float32) + 1.0) / H - 1.0
    base = jnp.stack(
        [
            jnp.broadcast_to(xs[None, :], (H, W)),
            jnp.broadcast_to(ys[:, None], (H, W)),
            jnp.ones((H, W), jnp.float32),
        ],
        axis=-1,
    )  # (H, W, 3)
    return jnp.einsum("hwk,nck->nhwc", base, theta)  # (N, H, W, 2)


if __name__ == "__main__":
    key = jax.random.PRNGKey(0)
    batch = 2
    out_h, out_w = 16, 16

    # theta arrives flattened (as the module tolerates) -> view(-1, 2, 3)
    theta = jax.random.normal(key, (batch, 6), dtype=jnp.float32) * 0.5
    theta = theta + jnp.tile(
        jnp.array([1.0, 0.0, 0.0, 0.0, 1.0, 0.0], jnp.float32), (batch, 1)
    )

    gen = AffineGridGen(out_h=out_h, out_w=out_w, out_ch=3)
    grid = gen(theta)
    grid = jax.block_until_ready(grid)

    assert grid.shape == (batch, out_h, out_w, 2), grid.shape
    ref = _reference_affine_grid(theta.reshape(-1, 2, 3), out_h, out_w)
    assert jnp.allclose(grid, ref, atol=1e-5, rtol=1e-5), float(
        jnp.max(jnp.abs(grid - ref))
    )

    print("KERNEL_OK")
</pallas_src>

<mosaic_0001>
module attributes {stable_mosaic.version = 11 : i64} {
  func.func @_affine_grid_kernel(%arg0: i32, %arg1: memref<12xf32, #tpu.memory_space<smem>>, %arg2: memref<4x128xf32, #tpu.memory_space<vmem>>, %arg3: memref<4x128xf32, #tpu.memory_space<vmem>>, %arg4: memref<4x128xf32, #tpu.memory_space<vmem>>, %arg5: memref<2x4x128xf32, #tpu.memory_space<vmem>>) attributes {dimension_semantics = [#tpu.dimension_semantics<parallel>], iteration_bounds = array<i64: 1>, scalar_prefetch = 0 : i64, scratch_operands = 0 : i64, tpu.core_type = #tpu.core_type<tc>, window_params = [{transform_indices = @transform_0, window_bounds = array<i64: 12>}, {pipeline_mode = #tpu.pipeline_mode<synchronous>, transform_indices = @transform_1, window_bounds = array<i64: 4, 128>}, {pipeline_mode = #tpu.pipeline_mode<synchronous>, transform_indices = @transform_2, window_bounds = array<i64: 4, 128>}, {pipeline_mode = #tpu.pipeline_mode<synchronous>, transform_indices = @transform_3, window_bounds = array<i64: 4, 128>}, {transform_indices = @transform_4, window_bounds = array<i64: 2, 4, 128>}]} {
    %c0 = arith.constant 0 : index
    %c0_0 = arith.constant 0 : index
    %0 = vector.load %arg2[%c0, %c0_0] : memref<4x128xf32, #tpu.memory_space<vmem>>, vector<4x128xf32>
    %c0_1 = arith.constant 0 : index
    %c0_2 = arith.constant 0 : index
    %1 = vector.load %arg3[%c0_1, %c0_2] : memref<4x128xf32, #tpu.memory_space<vmem>>, vector<4x128xf32>
    %c0_3 = arith.constant 0 : index
    %c0_4 = arith.constant 0 : index
    %2 = vector.load %arg4[%c0_3, %c0_4] : memref<4x128xf32, #tpu.memory_space<vmem>>, vector<4x128xf32>
    %cst = arith.constant 0.000000e+00 : f32
    %3 = vector.broadcast %cst : f32 to vector<4x128xf32>
    %4 = arith.cmpf one, %2, %3 : vector<4x128xf32>
    %c0_i32 = arith.constant 0 : i32
    %c2_i32 = arith.constant 2 : i32
    %5 = arith.muli %arg0, %c2_i32 : i32
    %6 = arith.addi %5, %c0_i32 : i32
    %c1_i32 = arith.constant 1 : i32
    %7 = arith.minsi %6, %c1_i32 : i32
    %c6_i32 = arith.constant 6 : i32
    %8 = arith.muli %7, %c6_i32 : i32
    %c0_i32_5 = arith.constant 0 : i32
    %9 = arith.addi %8, %c0_i32_5 : i32
    %10 = arith.index_cast %9 : i32 to index
    %11 = memref.load %arg1[%10] : memref<12xf32, #tpu.memory_space<smem>>
    %c1_i32_6 = arith.constant 1 : i32
    %12 = arith.addi %8, %c1_i32_6 : i32
    %13 = arith.index_cast %12 : i32 to index
    %14 = memref.load %arg1[%13] : memref<12xf32, #tpu.memory_space<smem>>
    %c2_i32_7 = arith.constant 2 : i32
    %15 = arith.addi %8, %c2_i32_7 : i32
    %16 = arith.index_cast %15 : i32 to index
    %17 = memref.load %arg1[%16] : memref<12xf32, #tpu.memory_space<smem>>
    %c3_i32 = arith.constant 3 : i32
    %18 = arith.addi %8, %c3_i32 : i32
    %19 = arith.index_cast %18 : i32 to index
    %20 = memref.load %arg1[%19] : memref<12xf32, #tpu.memory_space<smem>>
    %c4_i32 = arith.constant 4 : i32
    %21 = arith.addi %8, %c4_i32 : i32
    %22 = arith.index_cast %21 : i32 to index
    %23 = memref.load %arg1[%22] : memref<12xf32, #tpu.memory_space<smem>>
    %c5_i32 = arith.constant 5 : i32
    %24 = arith.addi %8, %c5_i32 : i32
    %25 = arith.index_cast %24 : i32 to index
    %26 = memref.load %arg1[%25] : memref<12xf32, #tpu.memory_space<smem>>
    %27 = vector.broadcast %11 : f32 to vector<4x128xf32>
    %28 = vector.broadcast %20 : f32 to vector<4x128xf32>
    %29 = arith.select %4, %27, %28 : vector<4x128xi1>, vector<4x128xf32>
    %30 = vector.broadcast %14 : f32 to vector<4x128xf32>
    %31 = vector.broadcast %23 : f32 to vector<4x128xf32>
    %32 = arith.select %4, %30, %31 : vector<4x128xi1>, vector<4x128xf32>
    %33 = vector.broadcast %17 : f32 to vector<4x128xf32>
    %34 = vector.broadcast %26 : f32 to vector<4x128xf32>
    %35 = arith.select %4, %33, %34 : vector<4x128xi1>, vector<4x128xf32>
    %36 = arith.mulf %29, %0 : vector<4x128xf32>
    %37 = arith.mulf %32, %1 : vector<4x128xf32>
    %38 = arith.addf %37, %35 : vector<4x128xf32>
    %39 = arith.addf %36, %38 : vector<4x128xf32>
    %40 = arith.index_cast %c0_i32 : i32 to index
    %c0_8 = arith.constant 0 : index
    %c0_9 = arith.constant 0 : index
    %41 = vector.load %arg5[%40, %c0_8, %c0_9] : memref<2x4x128xf32, #tpu.memory_space<vmem>>, vector<1x4x128xf32>
    %42 = vector.shape_cast %41 : vector<1x4x128xf32> to vector<4x128xf32>
    %43 = vector.shape_cast %39 : vector<4x128xf32> to vector<1x4x128xf32>
    tpu.vector_store %arg5[%40, %c0_8, %c0_9], %43 {strides = array<i32>} : memref<2x4x128xf32, #tpu.memory_space<vmem>>, vector<1x4x128xf32>,
    %c1_i32_10 = arith.constant 1 : i32
    %c2_i32_11 = arith.constant 2 : i32
    %44 = arith.muli %arg0, %c2_i32_11 : i32
    %45 = arith.addi %44, %c1_i32_10 : i32
    %c1_i32_12 = arith.constant 1 : i32
    %46 = arith.minsi %45, %c1_i32_12 : i32
    %c6_i32_13 = arith.constant 6 : i32
    %47 = arith.muli %46, %c6_i32_13 : i32
    %c0_i32_14 = arith.constant 0 : i32
    %48 = arith.addi %47, %c0_i32_14 : i32
    %49 = arith.index_cast %48 : i32 to index
    %50 = memref.load %arg1[%49] : memref<12xf32, #tpu.memory_space<smem>>
    %c1_i32_15 = arith.constant 1 : i32
    %51 = arith.addi %47, %c1_i32_15 : i32
    %52 = arith.index_cast %51 : i32 to index
    %53 = memref.load %arg1[%52] : memref<12xf32, #tpu.memory_space<smem>>
    %c2_i32_16 = arith.constant 2 : i32
    %54 = arith.addi %47, %c2_i32_16 : i32
    %55 = arith.index_cast %54 : i32 to index
    %56 = memref.load %arg1[%55] : memref<12xf32, #tpu.memory_space<smem>>
    %c3_i32_17 = arith.constant 3 : i32
    %57 = arith.addi %47, %c3_i32_17 : i32
    %58 = arith.index_cast %57 : i32 to index
    %59 = memref.load %arg1[%58] : memref<12xf32, #tpu.memory_space<smem>>
    %c4_i32_18 = arith.constant 4 : i32
    %60 = arith.addi %47, %c4_i32_18 : i32
    %61 = arith.index_cast %60 : i32 to index
    %62 = memref.load %arg1[%61] : memref<12xf32, #tpu.memory_space<smem>>
    %c5_i32_19 = arith.constant 5 : i32
    %63 = arith.addi %47, %c5_i32_19 : i32
    %64 = arith.index_cast %63 : i32 to index
    %65 = memref.load %arg1[%64] : memref<12xf32, #tpu.memory_space<smem>>
    %66 = vector.broadcast %50 : f32 to vector<4x128xf32>
    %67 = vector.broadcast %59 : f32 to vector<4x128xf32>
    %68 = arith.select %4, %66, %67 : vector<4x128xi1>, vector<4x128xf32>
    %69 = vector.broadcast %53 : f32 to vector<4x128xf32>
    %70 = vector.broadcast %62 : f32 to vector<4x128xf32>
    %71 = arith.select %4, %69, %70 : vector<4x128xi1>, vector<4x128xf32>
    %72 = vector.broadcast %56 : f32 to vector<4x128xf32>
    %73 = vector.broadcast %65 : f32 to vector<4x128xf32>
    %74 = arith.select %4, %72, %73 : vector<4x128xi1>, vector<4x128xf32>
    %75 = arith.mulf %68, %0 : vector<4x128xf32>
    %76 = arith.mulf %71, %1 : vector<4x128xf32>
    %77 = arith.addf %76, %74 : vector<4x128xf32>
    %78 = arith.addf %75, %77 : vector<4x128xf32>
    %79 = arith.index_cast %c1_i32_10 : i32 to index
    %c0_20 = arith.constant 0 : index
    %c0_21 = arith.constant 0 : index
    %80 = vector.load %arg5[%79, %c0_20, %c0_21] : memref<2x4x128xf32, #tpu.memory_space<vmem>>, vector<1x4x128xf32>
    %81 = vector.shape_cast %80 : vector<1x4x128xf32> to vector<4x128xf32>
    %82 = vector.shape_cast %78 : vector<4x128xf32> to vector<1x4x128xf32>
    tpu.vector_store %arg5[%79, %c0_20, %c0_21], %82 {strides = array<i32>} : memref<2x4x128xf32, #tpu.memory_space<vmem>>, vector<1x4x128xf32>,
    %c2_i32_22 = arith.constant 2 : i32
    return
  }
  func.func @transform_0(%arg0: i32) -> i32 {
    %c0_i32 = arith.constant 0 : i32
    %c0_i32_0 = arith.constant 0 : i32
    return %c0_i32 : i32
  }
  func.func @transform_1(%arg0: i32) -> (i32, i32) {
    %c0_i32 = arith.constant 0 : i32
    %c0_i32_0 = arith.constant 0 : i32
    %c0_i32_1 = arith.constant 0 : i32
    return %c0_i32, %c0_i32_0 : i32, i32
  }
  func.func @transform_2(%arg0: i32) -> (i32, i32) {
    %c0_i32 = arith.constant 0 : i32
    %c0_i32_0 = arith.constant 0 : i32
    %c0_i32_1 = arith.constant 0 : i32
    return %c0_i32, %c0_i32_0 : i32, i32
  }
  func.func @transform_3(%arg0: i32) -> (i32, i32) {
    %c0_i32 = arith.constant 0 : i32
    %c0_i32_0 = arith.constant 0 : i32
    %c0_i32_1 = arith.constant 0 : i32
    return %c0_i32, %c0_i32_0 : i32, i32
  }
  func.func @transform_4(%arg0: i32) -> (i32, i32, i32) {
    %c0_i32 = arith.constant 0 : i32
    %c0_i32_0 = arith.constant 0 : i32
    %c0_i32_1 = arith.constant 0 : i32
    return %arg0, %c0_i32, %c0_i32_0 : i32, i32, i32
  }
}

</mosaic_0001>

<llo_original>
// kernel: tpu_custom_call.1
$region0: #{tpu_custom_call.1}
  #allocation0 [shape = 'u32[]', space=smem, size = 0x4, offset = 0x4, fixed_abs, tag = 'smem constant byte address 0x4 - core index']
  #allocation1 [shape = 'u32[144,128]{1,0:T(1,128)}', space=vmem, size = 0x12000, scoped, tag = 'internal scratch']
  %s0 = inlined_call_operand.hbm [shape: f32[12], index: 0, kind: input, shape index: {}]
  %s1 = inlined_call_operand.hbm [shape: f32[4,128], index: 1, kind: input, shape index: {}]
  %s2 = inlined_call_operand.vmem [shape: f32[4,128], index: 2, kind: input, shape index: {}]
  %s3 = inlined_call_operand.vmem [shape: f32[4,128], index: 3, kind: input, shape index: {}]
  %s4 = inlined_call_operand.hbm [shape: f32[2,4,128], index: 4, kind: output, shape index: {}]
  %s5 = sld [smem:[#allocation0]]
  $region34: #{tpu_custom_call.1} parent=0
    _
  %s7 = ssub.s32 1, %s5
  %s8 = scalar_select 0, %s7, %s5
  $region1: #{tpu_custom_call.1} parent=0
    #allocation2 [shape = 'u8[512]{0}', space=smem, size = 0x200, scoped, tag = 'input window, operand 0, single buffered']
    #allocation3 [shape = 's32[1]{0}', space=sflag, size = 0x4, scoped, tag = 'scoped memory for tpu_custom_call.1']
    #allocation4 [shape = 's32[1]{0}', space=sflag, size = 0x4, scoped, tag = 'scoped memory for tpu_custom_call.1']
    #allocation5 [shape = 's32[1]{0}', space=sflag, size = 0x4, scoped, tag = 'scoped memory for tpu_custom_call.1']
    #allocation6 [shape = 'u8[2048]{0}', space=vmem, size = 0x800, scoped, tag = 'input window, operand 1, single buffered']
    #allocation7 [shape = 'u8[4096]{0}', space=vmem, size = 0x1000, scoped, tag = 'output window, operand 0, single buffered']
    %9 = vsyncpa [#allocation5], 0
    %10 = vsyncpa [#allocation3], 0
    %11 = vsyncpa [#allocation4], 0
    // Predicated region
    $region2: #{tpu_custom_call.1} parent=1 // pred_check
      _
    $region3: #{tpu_custom_call.1} parent=1 // pred_check_branch
      %13 = sbr.rel (0) target = $region5
    $region4: #{tpu_custom_call.1} parent=1 // pred_region
      %s15 = ssub.s32 16, 16
      %16 = vsyncadd [#allocation5], %s15
      %19 = dma.hbm_to_smem %s0, 16, [#allocation2], [#allocation5]
    $region5: #{tpu_custom_call.1} parent=1 // pred_fallthru
      _
    // Predicated region
    $region6: #{tpu_custom_call.1} parent=1 // pred_check
      _
    $region7: #{tpu_custom_call.1} parent=1 // pred_check_branch
      %21 = sbr.rel (0) target = $region9
    $region8: #{tpu_custom_call.1} parent=1 // pred_region
      %s23 = ssub.s32 64, 64
      %24 = vsyncadd [#allocation3], %s23
      %s26 = sshll.u32 [#allocation6], 4
      %s27 = int_to_ptr.vmem [resolvable:$true] %s26
      %29 = dma.hbm_to_vmem [thread:$0]  %s1, 64, %s27, [#allocation3]
    $region9: #{tpu_custom_call.1} parent=1 // pred_fallthru
      _
    // Predicated region
    $region10: #{tpu_custom_call.1} parent=1 // pred_check
      _
    $region11: #{tpu_custom_call.1} parent=1 // pred_check_branch
      %31 = sbr.rel (0) target = $region13
    $region12: #{tpu_custom_call.1} parent=1 // pred_region
      _
    $region13: #{tpu_custom_call.1} parent=1 // pred_fallthru
      _
    // Predicated region
    $region14: #{tpu_custom_call.1} parent=1 // pred_check
      _
    $region15: #{tpu_custom_call.1} parent=1 // pred_check_branch
      %33 = sbr.rel (0) target = $region17
    $region16: #{tpu_custom_call.1} parent=1 // pred_region
      _
    $region17: #{tpu_custom_call.1} parent=1 // pred_fallthru
      _
    // Predicated region
    $region18: #{tpu_custom_call.1} parent=1 // pred_check
      _
    $region19: #{tpu_custom_call.1} parent=1 // pred_check_branch
      %35 = sbr.rel (0) target = $region21
    $region20: #{tpu_custom_call.1} parent=1 // pred_region
      %36 = dma.done [#allocation5], 16
    $region21: #{tpu_custom_call.1} parent=1 // pred_fallthru
      _
    // Predicated region
    $region22: #{tpu_custom_call.1} parent=1 // pred_check
      _
    $region23: #{tpu_custom_call.1} parent=1 // pred_check_branch
      %38 = sbr.rel (0) target = $region25
    $region24: #{tpu_custom_call.1} parent=1 // pred_region
      %39 = dma.done [#allocation3], 64
    $region25: #{tpu_custom_call.1} parent=1 // pred_fallthru
      _
    %40 = sfence
    %v41 = vld [vmem:[#allocation6] sm:$0xf]
    %v42 = vld [vmem:[%s2] sm:$0xf]
    %v43 = vld [vmem:[%s3] sm:$0xf]
    %vm44 = vcmp.ne.f32.partialorder %v43, 0.0
    %s45 = smul.u32 0, 2
    %p46 = scmp.lt.s32.totalorder %s45, 1
    %s47 = scalar_select %p46, %s45, 1
    %s48 = smul.u32 %s47, 6
    %s49 = sld [smem:[#allocation2 + %s48]]
    %s50 = sadd.s32 %s48, 1
    %s51 = sld [smem:[#allocation2 + %s50]]
    %s52 = sadd.s32 %s48, 2
    %s53 = sld [smem:[#allocation2 + %s52]]
    %s54 = sadd.s32 %s48, 3
    %s55 = sld [smem:[#allocation2 + %s54]]
    %s56 = sadd.s32 %s48, 4
    %s57 = sld [smem:[#allocation2 + %s56]]
    %s58 = sadd.s32 %s48, 5
    %s59 = sld [smem:[#allocation2 + %s58]]
    %v60 = vstv %s49
    %v61 = vstv %s55
    %v62 = vsel %vm44, %v60, %v61
    %v63 = vstv %s51
    %v64 = vstv %s57
    %v65 = vsel %vm44, %v63, %v64
    %v66 = vstv %s53
    %v67 = vstv %s59
    %v68 = vsel %vm44, %v66, %v67
    %v69 = vmul.f32 %v62, %v41
    %v70 = vmul.f32 %v65, %v42
    %v71 = vadd.f32 %v70, %v68
    %v72 = vadd.f32 %v69, %v71
    %73 = vst [vmem:[#allocation7] sm:$0xf] %v72
    %s74 = sadd.s32 %s45, 1
    %p75 = scmp.lt.s32.totalorder %s74, 1
    %s76 = scalar_select %p75, %s74, 1
    %s77 = smul.u32 %s76, 6
    %s78 = sld [smem:[#allocation2 + %s77]]
    %s79 = sadd.s32 %s77, 1
    %s80 = sld [smem:[#allocation2 + %s79]]
    %s81 = sadd.s32 %s77, 2
    %s82 = sld [smem:[#allocation2 + %s81]]
    %s83 = sadd.s32 %s77, 3
    %s84 = sld [smem:[#allocation2 + %s83]]
    %s85 = sadd.s32 %s77, 4
    %s86 = sld [smem:[#allocation2 + %s85]]
    %s87 = sadd.s32 %s77, 5
    %s88 = sld [smem:[#allocation2 + %s87]]
    %v89 = vstv %s78
    %v90 = vstv %s84
    %v91 = vsel %vm44, %v89, %v90
    %v92 = vstv %s80
    %v93 = vstv %s86
    %v94 = vsel %vm44, %v92, %v93
    %v95 = vstv %s82
    %v96 = vstv %s88
    %v97 = vsel %vm44, %v95, %v96
    %v98 = vmul.f32 %v91, %v41
    %v99 = vmul.f32 %v94, %v42
    %v100 = vadd.f32 %v99, %v97
    %v101 = vadd.f32 %v98, %v100
    %s102 = scalar_lea.vmem [#allocation7], 4
    %103 = vst [vmem:[%s102] sm:$0xf] %v101
    // Predicated region
    $region26: #{tpu_custom_call.1} parent=1 // pred_check
      _
    $region27: #{tpu_custom_call.1} parent=1 // pred_check_branch
      %105 = sbr.rel (0) target = $region29
    $region28: #{tpu_custom_call.1} parent=1 // pred_region
      %s107 = ssub.s32 128, 128
      %108 = vsyncadd [#allocation4], %s107
      %s109 = sshll.u32 [#allocation7], 4
      %s110 = int_to_ptr.vmem [resolvable:$true] %s109
      %115 = dma.vmem_to_hbm [thread:$0]  %s110, 128, %s4, [#allocation4], 64, 64, 4
    $region29: #{tpu_custom_call.1} parent=1 // pred_fallthru
      _
    // Predicated region
    $region30: #{tpu_custom_call.1} parent=1 // pred_check
      _
    $region31: #{tpu_custom_call.1} parent=1 // pred_check_branch
      %117 = sbr.rel (0) target = $region33
    $region32: #{tpu_custom_call.1} parent=1 // pred_region
      %118 = dma.done [#allocation4], 128
    $region33: #{tpu_custom_call.1} parent=1 // pred_fallthru
      _
    %119 = vsyncpa [#allocation3], 1
    %120 = vsyncpa [#allocation4], 1
    %121 = vsyncpa [#allocation5], 1

</llo_original>
